<compile_context>
chip_gen: v7x
topology: tpu7x:2x2x1
jax: 0.10.0
libtpu: 0.0.40
codegen_flags: <defaults>
</compile_context>

<pallas_src>
import jax
import jax.numpy as jnp
from jax.experimental import pallas as pl
from jax.experimental.pallas import tpu as pltpu


def _resblock1x1_kernel(x_ref, w1_ref, b1_ref, w2_ref, b2_ref, o_ref):
    # x_ref/o_ref: (Bt, C, t_hw)  channels on sublanes, H*W slice on lanes
    # w*_ref:      (C, C)         BN-scale-folded 1x1 conv weights [out_c, in_c]
    # b*_ref:      (C, 1)         folded BN shift (broadcast over lanes)
    w1 = w1_ref[...]            # hoisted once per grid step (not per batch iter)
    b1 = b1_ref[...]
    w2 = w2_ref[...]
    b2 = b2_ref[...]
    bt = x_ref.shape[0]

    def body(b, carry):
        x = x_ref[b]                                           # (C, t_hw)
        # conv1 (1x1) + BN1 (folded) -> ReLU
        h = jnp.dot(w1, x, preferred_element_type=jnp.float32)
        h = jnp.maximum(h + b1, 0.0)
        # conv2 (1x1) + BN2 (folded) -> ReLU
        h = jnp.dot(w2, h, preferred_element_type=jnp.float32)
        h = jnp.maximum(h + b2, 0.0)
        # residual add
        o_ref[b] = (h + x.astype(jnp.float32)).astype(o_ref.dtype)
        return carry

    # Short batch tiles are fully unrolled for LLO scheduler visibility.
    jax.lax.fori_loop(0, bt, body, 0, unroll=(bt <= 8))


def _choose_tiles(N, C, HW, itemsize, target_bytes=2 << 20):
    """Pick (batch_tile, spatial_tile) so a block carries ~target_bytes."""
    lanes_target = max(128, target_bytes // (C * itemsize))
    if HW > lanes_target:
        # Large maps: tile the spatial axis in multiples of 128 lanes.
        t_hw = min(max(128, (lanes_target // 128) * 128), HW)
        bt = 1
    else:
        # Small maps: full H*W per image, batch several images per block.
        t_hw = HW
        bt_target = max(1, target_bytes // (C * HW * itemsize))
        if N >= 4:
            # keep >= 2 grid steps so megacore (v7x) has work for both cores
            bt_target = min(bt_target, N // 2)
        bt = max(d for d in range(1, N + 1) if N % d == 0 and d <= bt_target)
    return bt, t_hw


@jax.jit
def resblock1x1(x_nchw, w1, g1, be1, m1, v1, w2, g2, be2, m2, v2, eps=1e-5):
    """x_nchw: [N, C, H, W].  w*: [out_c, in_c, 1, 1] conv weights (no bias).
    g/be/m/v: BatchNorm gamma/beta/running_mean/running_var, each [C]."""
    N, C, H, W = x_nchw.shape
    dtype = x_nchw.dtype
    HW = H * W
    itemsize = jnp.dtype(dtype).itemsize

    # Fold BN (eval semantics): scale into the conv weight rows, keep shift.
    s1 = (g1 / jnp.sqrt(v1 + eps)).astype(jnp.float32)
    s2 = (g2 / jnp.sqrt(v2 + eps)).astype(jnp.float32)
    b1 = (be1.astype(jnp.float32) - m1.astype(jnp.float32) * s1).reshape(C, 1)
    b2 = (be2.astype(jnp.float32) - m2.astype(jnp.float32) * s2).reshape(C, 1)
    # Folded weights in the activation dtype: bf16 activations -> native bf16
    # MXU (f32 accumulation); f32 activations -> exact f32 path.
    w1p = (w1[:, :, 0, 0].astype(jnp.float32) * s1[:, None]).astype(dtype)
    w2p = (w2[:, :, 0, 0].astype(jnp.float32) * s2[:, None]).astype(dtype)

    Bt, t_hw = _choose_tiles(N, C, HW, itemsize)
    x3 = x_nchw.reshape(N, C, HW)          # free reshape (NCHW contiguous)
    grid = (N // Bt, pl.cdiv(HW, t_hw))    # Bt divides N by construction

    # Explicit VMEM budget: double-buffered in+out blocks, f32 intermediates,
    # double-buffered weight/bias tiles, plus headroom.  Floor at 32 MiB so
    # v5e's 16 MiB default scoped limit does not reject the larger tiles; cap
    # at 56 MiB to stay within v7x's 64 MiB physical VMEM.
    block_bytes = Bt * C * t_hw * itemsize
    vmem_need = (4 * block_bytes + 2 * Bt * C * t_hw * 4
                 + 4 * (C * C + C) * max(itemsize, 4) + (4 << 20))
    vmem_limit = int(min(max(vmem_need, 32 << 20), 56 << 20))

    out3 = pl.pallas_call(
        _resblock1x1_kernel,
        out_shape=jax.ShapeDtypeStruct((N, C, HW), dtype),
        grid_spec=pltpu.PrefetchScalarGridSpec(
            num_scalar_prefetch=0,
            grid=grid,
            in_specs=[
                pl.BlockSpec((Bt, C, t_hw), lambda n, s: (n, 0, s)),  # x tile
                pl.BlockSpec((C, C), lambda n, s: (0, 0)),            # w1 folded
                pl.BlockSpec((C, 1), lambda n, s: (0, 0)),            # shift1
                pl.BlockSpec((C, C), lambda n, s: (0, 0)),            # w2 folded
                pl.BlockSpec((C, 1), lambda n, s: (0, 0)),            # shift2
            ],
            out_specs=pl.BlockSpec((Bt, C, t_hw), lambda n, s: (n, 0, s)),
        ),
        compiler_params=pltpu.CompilerParams(
            dimension_semantics=("parallel", "parallel"),
            vmem_limit_bytes=vmem_limit),
    )(x3, w1p, b1, w2p, b2)

    return out3.reshape(N, C, H, W)


def _reference(x, w1, g1, be1, m1, v1, w2, g2, be2, m2, v2, eps=1e-5):
    def block(h, w, g, be, m, v):
        y = jnp.einsum('oc,nchw->nohw', w[:, :, 0, 0], h)
        y = (y - m[None, :, None, None]) / jnp.sqrt(v[None, :, None, None] + eps)
        y = y * g[None, :, None, None] + be[None, :, None, None]
        return jnp.maximum(y, 0.0)
    h = block(x, w1, g1, be1, m1, v1)
    h = block(h, w2, g2, be2, m2, v2)
    return h + x


if __name__ == "__main__":
    key = jax.random.PRNGKey(0)
    N, C, H, W = 2, 4, 16, 16  # c0 = 4

    keys = jax.random.split(key, 11)
    x = jax.random.normal(keys[0], (N, C, H, W), dtype=jnp.float32)

    # conv weights: [out_c, in_c, 1, 1], no bias
    w1 = jax.random.normal(keys[1], (C, C, 1, 1), dtype=jnp.float32) * 0.5
    w2 = jax.random.normal(keys[2], (C, C, 1, 1), dtype=jnp.float32) * 0.5
    # BatchNorm params (eval-mode / running stats), deterministic
    g1 = jax.random.uniform(keys[3], (C,), minval=0.5, maxval=1.5)
    be1 = jax.random.normal(keys[4], (C,)) * 0.1
    m1 = jax.random.normal(keys[5], (C,)) * 0.1
    v1 = jax.random.uniform(keys[6], (C,), minval=0.5, maxval=1.5)
    g2 = jax.random.uniform(keys[7], (C,), minval=0.5, maxval=1.5)
    be2 = jax.random.normal(keys[8], (C,)) * 0.1
    m2 = jax.random.normal(keys[9], (C,)) * 0.1
    v2 = jax.random.uniform(keys[10], (C,), minval=0.5, maxval=1.5)

    out = resblock1x1(x, w1, g1, be1, m1, v1, w2, g2, be2, m2, v2)
    out = jax.block_until_ready(out)

    ref = _reference(x, w1, g1, be1, m1, v1, w2, g2, be2, m2, v2)
    assert out.shape == (N, C, H, W)
    assert jnp.allclose(out, ref, atol=1e-4, rtol=1e-4), (
        float(jnp.max(jnp.abs(out - ref))))

    print("KERNEL_OK")
</pallas_src>

<mosaic_0001>
module attributes {stable_mosaic.version = 11 : i64} {
  func.func @_resblock1x1_kernel(%arg0: i32, %arg1: i32, %arg2: memref<2x4x256xf32, #tpu.memory_space<vmem>>, %arg3: memref<4x4xf32, #tpu.memory_space<vmem>>, %arg4: memref<4x1xf32, #tpu.memory_space<vmem>>, %arg5: memref<4x4xf32, #tpu.memory_space<vmem>>, %arg6: memref<4x1xf32, #tpu.memory_space<vmem>>, %arg7: memref<2x4x256xf32, #tpu.memory_space<vmem>>) attributes {dimension_semantics = [#tpu.dimension_semantics<parallel>, #tpu.dimension_semantics<parallel>], iteration_bounds = array<i64: 1, 1>, scalar_prefetch = 0 : i64, scratch_operands = 0 : i64, tpu.core_type = #tpu.core_type<tc>, window_params = [{transform_indices = @transform_0, window_bounds = array<i64: 2, 4, 256>}, {pipeline_mode = #tpu.pipeline_mode<synchronous>, transform_indices = @transform_1, window_bounds = array<i64: 4, 4>}, {pipeline_mode = #tpu.pipeline_mode<synchronous>, transform_indices = @transform_2, window_bounds = array<i64: 4, 1>}, {pipeline_mode = #tpu.pipeline_mode<synchronous>, transform_indices = @transform_3, window_bounds = array<i64: 4, 4>}, {pipeline_mode = #tpu.pipeline_mode<synchronous>, transform_indices = @transform_4, window_bounds = array<i64: 4, 1>}, {transform_indices = @transform_5, window_bounds = array<i64: 2, 4, 256>}]} {
    %c0 = arith.constant 0 : index
    %c0_0 = arith.constant 0 : index
    %0 = vector.load %arg3[%c0, %c0_0] : memref<4x4xf32, #tpu.memory_space<vmem>>, vector<4x4xf32>
    %c0_1 = arith.constant 0 : index
    %c0_2 = arith.constant 0 : index
    %1 = vector.load %arg4[%c0_1, %c0_2] : memref<4x1xf32, #tpu.memory_space<vmem>>, vector<4x1xf32>
    %c0_3 = arith.constant 0 : index
    %c0_4 = arith.constant 0 : index
    %2 = vector.load %arg5[%c0_3, %c0_4] : memref<4x4xf32, #tpu.memory_space<vmem>>, vector<4x4xf32>
    %c0_5 = arith.constant 0 : index
    %c0_6 = arith.constant 0 : index
    %3 = vector.load %arg6[%c0_5, %c0_6] : memref<4x1xf32, #tpu.memory_space<vmem>>, vector<4x1xf32>
    %c0_i32 = arith.constant 0 : i32
    %4 = arith.index_cast %c0_i32 : i32 to index
    %c0_7 = arith.constant 0 : index
    %c0_8 = arith.constant 0 : index
    %5 = vector.load %arg2[%4, %c0_7, %c0_8] : memref<2x4x256xf32, #tpu.memory_space<vmem>>, vector<1x4x256xf32>
    %6 = vector.shape_cast %5 : vector<1x4x256xf32> to vector<4x256xf32>
    %cst = arith.constant dense<0.000000e+00> : vector<4x256xf32>
    %7 = tpu.matmul %0, %6, %cst {dimension_numbers = #tpu.dot_dimension_numbers<[1], [0], [0], [1], [0, 0, 1, 1], [], []>} : vector<4x4xf32>, vector<4x256xf32>, vector<4x256xf32> -> vector<4x256xf32>
    %8 = vector.broadcast %1 : vector<4x1xf32> to vector<4x256xf32>
    %9 = arith.addf %7, %8 : vector<4x256xf32>
    %cst_9 = arith.constant 0.000000e+00 : f32
    %10 = vector.broadcast %cst_9 : f32 to vector<4x256xf32>
    %11 = arith.maximumf %9, %10 : vector<4x256xf32>
    %cst_10 = arith.constant dense<0.000000e+00> : vector<4x256xf32>
    %12 = tpu.matmul %2, %11, %cst_10 {dimension_numbers = #tpu.dot_dimension_numbers<[1], [0], [0], [1], [0, 0, 1, 1], [], []>} : vector<4x4xf32>, vector<4x256xf32>, vector<4x256xf32> -> vector<4x256xf32>
    %13 = vector.broadcast %3 : vector<4x1xf32> to vector<4x256xf32>
    %14 = arith.addf %12, %13 : vector<4x256xf32>
    %cst_11 = arith.constant 0.000000e+00 : f32
    %15 = vector.broadcast %cst_11 : f32 to vector<4x256xf32>
    %16 = arith.maximumf %14, %15 : vector<4x256xf32>
    %17 = arith.addf %16, %6 : vector<4x256xf32>
    %18 = arith.index_cast %c0_i32 : i32 to index
    %c0_12 = arith.constant 0 : index
    %c0_13 = arith.constant 0 : index
    %19 = vector.load %arg7[%18, %c0_12, %c0_13] : memref<2x4x256xf32, #tpu.memory_space<vmem>>, vector<1x4x256xf32>
    %20 = vector.shape_cast %19 : vector<1x4x256xf32> to vector<4x256xf32>
    %21 = vector.shape_cast %17 : vector<4x256xf32> to vector<1x4x256xf32>
    tpu.vector_store %arg7[%18, %c0_12, %c0_13], %21 {strides = array<i32>} : memref<2x4x256xf32, #tpu.memory_space<vmem>>, vector<1x4x256xf32>,
    %c1_i32 = arith.constant 1 : i32
    %22 = arith.index_cast %c1_i32 : i32 to index
    %c0_14 = arith.constant 0 : index
    %c0_15 = arith.constant 0 : index
    %23 = vector.load %arg2[%22, %c0_14, %c0_15] : memref<2x4x256xf32, #tpu.memory_space<vmem>>, vector<1x4x256xf32>
    %24 = vector.shape_cast %23 : vector<1x4x256xf32> to vector<4x256xf32>
    %cst_16 = arith.constant dense<0.000000e+00> : vector<4x256xf32>
    %25 = tpu.matmul %0, %24, %cst_16 {dimension_numbers = #tpu.dot_dimension_numbers<[1], [0], [0], [1], [0, 0, 1, 1], [], []>} : vector<4x4xf32>, vector<4x256xf32>, vector<4x256xf32> -> vector<4x256xf32>
    %26 = vector.broadcast %1 : vector<4x1xf32> to vector<4x256xf32>
    %27 = arith.addf %25, %26 : vector<4x256xf32>
    %cst_17 = arith.constant 0.000000e+00 : f32
    %28 = vector.broadcast %cst_17 : f32 to vector<4x256xf32>
    %29 = arith.maximumf %27, %28 : vector<4x256xf32>
    %cst_18 = arith.constant dense<0.000000e+00> : vector<4x256xf32>
    %30 = tpu.matmul %2, %29, %cst_18 {dimension_numbers = #tpu.dot_dimension_numbers<[1], [0], [0], [1], [0, 0, 1, 1], [], []>} : vector<4x4xf32>, vector<4x256xf32>, vector<4x256xf32> -> vector<4x256xf32>
    %31 = vector.broadcast %3 : vector<4x1xf32> to vector<4x256xf32>
    %32 = arith.addf %30, %31 : vector<4x256xf32>
    %cst_19 = arith.constant 0.000000e+00 : f32
    %33 = vector.broadcast %cst_19 : f32 to vector<4x256xf32>
    %34 = arith.maximumf %32, %33 : vector<4x256xf32>
    %35 = arith.addf %34, %24 : vector<4x256xf32>
    %36 = arith.index_cast %c1_i32 : i32 to index
    %c0_20 = arith.constant 0 : index
    %c0_21 = arith.constant 0 : index
    %37 = vector.load %arg7[%36, %c0_20, %c0_21] : memref<2x4x256xf32, #tpu.memory_space<vmem>>, vector<1x4x256xf32>
    %38 = vector.shape_cast %37 : vector<1x4x256xf32> to vector<4x256xf32>
    %39 = vector.shape_cast %35 : vector<4x256xf32> to vector<1x4x256xf32>
    tpu.vector_store %arg7[%36, %c0_20, %c0_21], %39 {strides = array<i32>} : memref<2x4x256xf32, #tpu.memory_space<vmem>>, vector<1x4x256xf32>,
    %c2_i32 = arith.constant 2 : i32
    return
  }
  func.func @transform_0(%arg0: i32, %arg1: i32) -> (i32, i32, i32) {
    %c0_i32 = arith.constant 0 : i32
    %c0_i32_0 = arith.constant 0 : i32
    return %arg0, %c0_i32, %arg1 : i32, i32, i32
  }
  func.func @transform_1(%arg0: i32, %arg1: i32) -> (i32, i32) {
    %c0_i32 = arith.constant 0 : i32
    %c0_i32_0 = arith.constant 0 : i32
    %c0_i32_1 = arith.constant 0 : i32
    return %c0_i32, %c0_i32_0 : i32, i32
  }
  func.func @transform_2(%arg0: i32, %arg1: i32) -> (i32, i32) {
    %c0_i32 = arith.constant 0 : i32
    %c0_i32_0 = arith.constant 0 : i32
    %c0_i32_1 = arith.constant 0 : i32
    return %c0_i32, %c0_i32_0 : i32, i32
  }
  func.func @transform_3(%arg0: i32, %arg1: i32) -> (i32, i32) {
    %c0_i32 = arith.constant 0 : i32
    %c0_i32_0 = arith.constant 0 : i32
    %c0_i32_1 = arith.constant 0 : i32
    return %c0_i32, %c0_i32_0 : i32, i32
  }
  func.func @transform_4(%arg0: i32, %arg1: i32) -> (i32, i32) {
    %c0_i32 = arith.constant 0 : i32
    %c0_i32_0 = arith.constant 0 : i32
    %c0_i32_1 = arith.constant 0 : i32
    return %c0_i32, %c0_i32_0 : i32, i32
  }
  func.func @transform_5(%arg0: i32, %arg1: i32) -> (i32, i32, i32) {
    %c0_i32 = arith.constant 0 : i32
    %c0_i32_0 = arith.constant 0 : i32
    return %arg0, %c0_i32, %arg1 : i32, i32, i32
  }
}

</mosaic_0001>

<llo_original>
// kernel: resblock1x1.1
$region0: #{resblock1x1.1}
  #allocation0 [shape = 'u32[]', space=smem, size = 0x4, offset = 0x4, fixed_abs, tag = 'smem constant byte address 0x4 - core index']
  #allocation1 [shape = 'u32[144,128]{1,0:T(1,128)}', space=vmem, size = 0x12000, scoped, tag = 'internal scratch']
  %s0 = inlined_call_operand.vmem [shape: f32[2,4,256], index: 0, kind: input, shape index: {}]
  %s1 = inlined_call_operand.vmem [shape: f32[4,4], index: 1, kind: input, shape index: {}]
  %s2 = inlined_call_operand.vmem [shape: f32[4,1], index: 2, kind: input, shape index: {}]
  %s3 = inlined_call_operand.vmem [shape: f32[4,4], index: 3, kind: input, shape index: {}]
  %s4 = inlined_call_operand.vmem [shape: f32[4,1], index: 4, kind: input, shape index: {}]
  %s5 = inlined_call_operand.vmem [shape: f32[2,4,256], index: 5, kind: output, shape index: {}]
  %s6 = sld [smem:[#allocation0]]
  $region30: #{resblock1x1.1} parent=0
    _
  %s8 = ssub.s32 1, %s6
  %s9 = scalar_select 0, %s8, %s6
  // Predicated region
  $region2: #{resblock1x1.1} parent=0 // pred_check
    _
  $region3: #{resblock1x1.1} parent=0 // pred_check_branch
    %11 = sbr.rel (0) target = $region5
  $region4: #{resblock1x1.1} parent=0 // pred_region
    _
  $region5: #{resblock1x1.1} parent=0 // pred_fallthru
    _
  // Predicated region
  $region6: #{resblock1x1.1} parent=0 // pred_check
    _
  $region7: #{resblock1x1.1} parent=0 // pred_check_branch
    %13 = sbr.rel (0) target = $region9
  $region8: #{resblock1x1.1} parent=0 // pred_region
    _
  $region9: #{resblock1x1.1} parent=0 // pred_fallthru
    _
  // Predicated region
  $region10: #{resblock1x1.1} parent=0 // pred_check
    _
  $region11: #{resblock1x1.1} parent=0 // pred_check_branch
    %15 = sbr.rel (0) target = $region13
  $region12: #{resblock1x1.1} parent=0 // pred_region
    _
  $region13: #{resblock1x1.1} parent=0 // pred_fallthru
    _
  // Predicated region
  $region14: #{resblock1x1.1} parent=0 // pred_check
    _
  $region15: #{resblock1x1.1} parent=0 // pred_check_branch
    %17 = sbr.rel (0) target = $region17
  $region16: #{resblock1x1.1} parent=0 // pred_region
    _
  $region17: #{resblock1x1.1} parent=0 // pred_fallthru
    _
  // Predicated region
  $region18: #{resblock1x1.1} parent=0 // pred_check
    _
  $region19: #{resblock1x1.1} parent=0 // pred_check_branch
    %19 = sbr.rel (0) target = $region21
  $region20: #{resblock1x1.1} parent=0 // pred_region
    _
  $region21: #{resblock1x1.1} parent=0 // pred_fallthru
    _
  %v20 = vld [vmem:[%s1] sm:$0xf]
  %v21 = vld [vmem:[%s2] sm:$0xf]
  %v22 = vld [vmem:[%s3] sm:$0xf]
  %v23 = vld [vmem:[%s4] sm:$0xf]
  %v24 = vld [vmem:[%s0] sm:$0xff]
  %26 = vset.pattern.permute.xlu0 0
  %27 = vperm.xlu0 %26, %v21
  %v28 = vpop.permute.xlu0 %27
  %v31 = vcombine.high %v24, %v24
  %vm32 = vcmask 31744
  %v34 = vsel %vm32, %v20, 0
  %vm36 = vcmask 1043456
  %v37 = vsel %vm36, %v24, 0
  %v39 = vsel %vm36, %v31, 0
  %41 = vmatprep.subr.mxu0 %v39
  %42 = vmatpush1.msra.mxu0 %v37
  %43 = vmatprep.subr.mxu0 0.0
  %44 = vmatpush1.msra.mxu0 0.0
  %45 = vmatprep.subr.mxu0 0.0
  %46 = vmatpush1.msra.mxu0 0.0
  %47 = vmatprep.subr.mxu0 0.0
  %48 = vmatpush1.msra.mxu0 0.0
  %49 = vmatprep.subr.mxu0 0.0
  %50 = vmatpush1.msra.mxu0 0.0
  %51 = vmatprep.subr.mxu0 0.0
  %52 = vmatpush1.msra.mxu0 0.0
  %53 = vmatprep.subr.mxu0 0.0
  %54 = vmatpush1.msra.mxu0 0.0
  %55 = vmatprep.subr.mxu0 0.0
  %56 = vmatpush1.msra.mxu0 0.0
  %57 = vmatprep.subr.mxu0 0.0
  %58 = vmatpush1.msra.mxu0 0.0
  %59 = vmatprep.subr.mxu0 0.0
  %60 = vmatpush1.msra.mxu0 0.0
  %61 = vmatprep.subr.mxu0 0.0
  %62 = vmatpush1.msra.mxu0 0.0
  %63 = vmatprep.subr.mxu0 0.0
  %64 = vmatpush1.msra.mxu0 0.0
  %65 = vmatprep.subr.mxu0 0.0
  %66 = vmatpush1.msra.mxu0 0.0
  %67 = vmatprep.subr.mxu0 0.0
  %68 = vmatpush1.msra.mxu0 0.0
  %69 = vmatprep.subr.mxu0 0.0
  %70 = vmatpush1.msra.mxu0 0.0
  %71 = vmatprep.subr.mxu0 0.0
  %72 = vmatpush1.msra.mxu0 0.0
  %73 = vmatprep.subr.mxu0 0.0
  %74 = vmatpush1.msra.mxu0 0.0
  %75 = vmatprep.subr.mxu0 0.0
  %76 = vmatpush1.msra.mxu0 0.0
  %77 = vmatprep.subr.mxu0 0.0
  %78 = vmatpush1.msra.mxu0 0.0
  %79 = vmatprep.subr.mxu0 0.0
  %80 = vmatpush1.msra.mxu0 0.0
  %81 = vmatprep.subr.mxu0 0.0
  %82 = vmatpush1.msra.mxu0 0.0
  %83 = vmatprep.subr.mxu0 0.0
  %84 = vmatpush1.msra.mxu0 0.0
  %85 = vmatprep.subr.mxu0 0.0
  %86 = vmatpush1.msra.mxu0 0.0
  %87 = vmatprep.subr.mxu0 0.0
  %88 = vmatpush1.msra.mxu0 0.0
  %89 = vmatprep.subr.mxu0 0.0
  %90 = vmatpush1.msra.mxu0 0.0
  %91 = vmatprep.subr.mxu0 0.0
  %92 = vmatpush1.msra.mxu0 0.0
  %93 = vmatprep.subr.mxu0 0.0
  %94 = vmatpush1.msra.mxu0 0.0
  %95 = vmatprep.subr.mxu0 0.0
  %96 = vmatpush1.msra.mxu0 0.0
  %97 = vmatprep.subr.mxu0 0.0
  %98 = vmatpush1.msra.mxu0 0.0
  %99 = vmatprep.subr.mxu0 0.0
  %100 = vmatpush1.msra.mxu0 0.0
  %101 = vmatprep.subr.mxu0 0.0
  %102 = vmatpush1.msra.mxu0 0.0
  %103 = vmatprep.subr.mxu0 0.0
  %104 = vmatpush1.msra.mxu0 0.0
  %105 = vmatprep.mubr.f32.mxu0 0.0
  %106 = vmatmul.mubr.f32.gmra.mrb[0].mxu0 %v34
  %v107 = vpop.f32.mrb[0].mxu0
  %v108 = vadd.f32 %v28, %v107
  %v109 = vpop.f32.mrb[0].mxu0
  %v110 = vadd.f32 %v28, %v109
  %111 = vdwg.mxu0
  %v112 = vmax.f32 %v108, 0.0
  %v113 = vmax.f32 %v110, 0.0
  %115 = vset.pattern.permute.xlu0 0
  %116 = vperm.xlu0 %115, %v23
  %v117 = vpop.permute.xlu0 %116
  %v120 = vsel %vm32, %v22, 0
  %v123 = vsel %vm36, %v112, 0
  %v126 = vsel %vm36, %v113, 0
  %128 = vmatprep.subr.mxu0 %v126
  %129 = vmatpush1.msra.mxu0 %v123
  %130 = vmatprep.subr.mxu0 0.0
  %131 = vmatpush1.msra.mxu0 0.0
  %132 = vmatprep.subr.mxu0 0.0
  %133 = vmatpush1.msra.mxu0 0.0
  %134 = vmatprep.subr.mxu0 0.0
  %135 = vmatpush1.msra.mxu0 0.0
  %136 = vmatprep.subr.mxu0 0.0
  %137 = vmatpush1.msra.mxu0 0.0
  %138 = vmatprep.subr.mxu0 0.0
  %139 = vmatpush1.msra.mxu0 0.0
  %140 = vmatprep.subr.mxu0 0.0
  %141 = vmatpush1.msra.mxu0 0.0
  %142 = vmatprep.subr.mxu0 0.0
  %143 = vmatpush1.msra.mxu0 0.0
  %144 = vmatprep.subr.mxu0 0.0
  %145 = vmatpush1.msra.mxu0 0.0
  %146 = vmatprep.subr.mxu0 0.0
  %147 = vmatpush1.msra.mxu0 0.0
  %148 = vmatprep.subr.mxu0 0.0
  %149 = vmatpush1.msra.mxu0 0.0
  %150 = vmatprep.subr.mxu0 0.0
  %151 = vmatpush1.msra.mxu0 0.0
  %152 = vmatprep.subr.mxu0 0.0
  %153 = vmatpush1.msra.mxu0 0.0
  %154 = vmatprep.subr.mxu0 0.0
  %155 = vmatpush1.msra.mxu0 0.0
  %156 = vmatprep.subr.mxu0 0.0
  %157 = vmatpush1.msra.mxu0 0.0
  %158 = vmatprep.subr.mxu0 0.0
  %159 = vmatpush1.msra.mxu0 0.0
  %160 = vmatprep.subr.mxu0 0.0
  %161 = vmatpush1.msra.mxu0 0.0
  %162 = vmatprep.subr.mxu0 0.0
  %163 = vmatpush1.msra.mxu0 0.0
  %164 = vmatprep.subr.mxu0 0.0
  %165 = vmatpush1.msra.mxu0 0.0
  %166 = vmatprep.subr.mxu0 0.0
  %167 = vmatpush1.msra.mxu0 0.0
  %168 = vmatprep.subr.mxu0 0.0
  %169 = vmatpush1.msra.mxu0 0.0
  %170 = vmatprep.subr.mxu0 0.0
  %171 = vmatpush1.msra.mxu0 0.0
  %172 = vmatprep.subr.mxu0 0.0
  %173 = vmatpush1.msra.mxu0 0.0
  %174 = vmatprep.subr.mxu0 0.0
  %175 = vmatpush1.msra.mxu0 0.0
  %176 = vmatprep.subr.mxu0 0.0
  %177 = vmatpush1.msra.mxu0 0.0
  %178 = vmatprep.subr.mxu0 0.0
  %179 = vmatpush1.msra.mxu0 0.0
  %180 = vmatprep.subr.mxu0 0.0
  %181 = vmatpush1.msra.mxu0 0.0
  %182 = vmatprep.subr.mxu0 0.0
  %183 = vmatpush1.msra.mxu0 0.0
  %184 = vmatprep.subr.mxu0 0.0
  %185 = vmatpush1.msra.mxu0 0.0
  %186 = vmatprep.subr.mxu0 0.0
  %187 = vmatpush1.msra.mxu0 0.0
  %188 = vmatprep.subr.mxu0 0.0
  %189 = vmatpush1.msra.mxu0 0.0
  %190 = vmatprep.subr.mxu0 0.0
  %191 = vmatpush1.msra.mxu0 0.0
  %192 = vmatprep.mubr.f32.mxu0 0.0
  %193 = vmatmul.mubr.f32.gmra.mrb[0].mxu0 %v120
  %v194 = vpop.f32.mrb[0].mxu0
  %v195 = vadd.f32 %v117, %v194
  %v196 = vpop.f32.mrb[0].mxu0
  %v197 = vadd.f32 %v117, %v196
  %198 = vdwg.mxu0
  %v199 = vmax.f32 %v195, 0.0
  %v200 = vmax.f32 %v197, 0.0
  %v202 = vadd.f32 %v199, %v24
  %v203 = vadd.f32 %v200, %v31
  %v206 = vcombine.low %v202, %v203
  %208 = vst [vmem:[%s5] sm:$0xff] %v206
  %s209 = scalar_lea.vmem %s0, 8
  %v210 = vld [vmem:[%s209] sm:$0xff]
  %v212 = vcombine.high %v210, %v210
  %v213 = vsel %vm36, %v210, 0
  %v215 = vsel %vm36, %v212, 0
  %217 = vmatprep.subr.mxu0 %v215
  %218 = vmatpush1.msra.mxu0 %v213
  %219 = vmatprep.subr.mxu0 0.0
  %220 = vmatpush1.msra.mxu0 0.0
  %221 = vmatprep.subr.mxu0 0.0
  %222 = vmatpush1.msra.mxu0 0.0
  %223 = vmatprep.subr.mxu0 0.0
  %224 = vmatpush1.msra.mxu0 0.0
  %225 = vmatprep.subr.mxu0 0.0
  %226 = vmatpush1.msra.mxu0 0.0
  %227 = vmatprep.subr.mxu0 0.0
  %228 = vmatpush1.msra.mxu0 0.0
  %229 = vmatprep.subr.mxu0 0.0
  %230 = vmatpush1.msra.mxu0 0.0
  %231 = vmatprep.subr.mxu0 0.0
  %232 = vmatpush1.msra.mxu0 0.0
  %233 = vmatprep.subr.mxu0 0.0
  %234 = vmatpush1.msra.mxu0 0.0
  %235 = vmatprep.subr.mxu0 0.0
  %236 = vmatpush1.msra.mxu0 0.0
  %237 = vmatprep.subr.mxu0 0.0
  %238 = vmatpush1.msra.mxu0 0.0
  %239 = vmatprep.subr.mxu0 0.0
  %240 = vmatpush1.msra.mxu0 0.0
  %241 = vmatprep.subr.mxu0 0.0
  %242 = vmatpush1.msra.mxu0 0.0
  %243 = vmatprep.subr.mxu0 0.0
  %244 = vmatpush1.msra.mxu0 0.0
  %245 = vmatprep.subr.mxu0 0.0
  %246 = vmatpush1.msra.mxu0 0.0
  %247 = vmatprep.subr.mxu0 0.0
  %248 = vmatpush1.msra.mxu0 0.0
  %249 = vmatprep.subr.mxu0 0.0
  %250 = vmatpush1.msra.mxu0 0.0
  %251 = vmatprep.subr.mxu0 0.0
  %252 = vmatpush1.msra.mxu0 0.0
  %253 = vmatprep.subr.mxu0 0.0
  %254 = vmatpush1.msra.mxu0 0.0
  %255 = vmatprep.subr.mxu0 0.0
  %256 = vmatpush1.msra.mxu0 0.0
  %257 = vmatprep.subr.mxu0 0.0
  %258 = vmatpush1.msra.mxu0 0.0
  %259 = vmatprep.subr.mxu0 0.0
  %260 = vmatpush1.msra.mxu0 0.0
  %261 = vmatprep.subr.mxu0 0.0
  %262 = vmatpush1.msra.mxu0 0.0
  %263 = vmatprep.subr.mxu0 0.0
  %264 = vmatpush1.msra.mxu0 0.0
  %265 = vmatprep.subr.mxu0 0.0
  %266 = vmatpush1.msra.mxu0 0.0
  %267 = vmatprep.subr.mxu0 0.0
  %268 = vmatpush1.msra.mxu0 0.0
  %269 = vmatprep.subr.mxu0 0.0
  %270 = vmatpush1.msra.mxu0 0.0
  %271 = vmatprep.subr.mxu0 0.0
  %272 = vmatpush1.msra.mxu0 0.0
  %273 = vmatprep.subr.mxu0 0.0
  %274 = vmatpush1.msra.mxu0 0.0
  %275 = vmatprep.subr.mxu0 0.0
  %276 = vmatpush1.msra.mxu0 0.0
  %277 = vmatprep.subr.mxu0 0.0
  %278 = vmatpush1.msra.mxu0 0.0
  %279 = vmatprep.subr.mxu0 0.0
  %280 = vmatpush1.msra.mxu0 0.0
  %281 = vmatprep.mubr.f32.mxu0 0.0
  %282 = vmatmul.mubr.f32.gmra.mrb[0].mxu0 %v34
  %v283 = vpop.f32.mrb[0].mxu0
  %v284 = vadd.f32 %v28, %v283
  %v285 = vpop.f32.mrb[0].mxu0
  %v286 = vadd.f32 %v28, %v285
  %287 = vdwg.mxu0
  %v288 = vmax.f32 %v284, 0.0
  %v289 = vmax.f32 %v286, 0.0
  %v291 = vsel %vm36, %v288, 0
  %v294 = vsel %vm36, %v289, 0
  %296 = vmatprep.subr.mxu0 %v294
  %297 = vmatpush1.msra.mxu0 %v291
  %298 = vmatprep.subr.mxu0 0.0
  %299 = vmatpush1.msra.mxu0 0.0
  %300 = vmatprep.subr.mxu0 0.0
  %301 = vmatpush1.msra.mxu0 0.0
  %302 = vmatprep.subr.mxu0 0.0
  %303 = vmatpush1.msra.mxu0 0.0
  %304 = vmatprep.subr.mxu0 0.0
  %305 = vmatpush1.msra.mxu0 0.0
  %306 = vmatprep.subr.mxu0 0.0
  %307 = vmatpush1.msra.mxu0 0.0
  %308 = vmatprep.subr.mxu0 0.0
  %309 = vmatpush1.msra.mxu0 0.0
  %310 = vmatprep.subr.mxu0 0.0
  %311 = vmatpush1.msra.mxu0 0.0
  %312 = vmatprep.subr.mxu0 0.0
  %313 = vmatpush1.msra.mxu0 0.0
  %314 = vmatprep.subr.mxu0 0.0
  %315 = vmatpush1.msra.mxu0 0.0
  %316 = vmatprep.subr.mxu0 0.0
  %317 = vmatpush1.msra.mxu0 0.0
  %318 = vmatprep.subr.mxu0 0.0
  %319 = vmatpush1.msra.mxu0 0.0
  %320 = vmatprep.subr.mxu0 0.0
  %321 = vmatpush1.msra.mxu0 0.0
  %322 = vmatprep.subr.mxu0 0.0
  %323 = vmatpush1.msra.mxu0 0.0
  %324 = vmatprep.subr.mxu0 0.0
  %325 = vmatpush1.msra.mxu0 0.0
  %326 = vmatprep.subr.mxu0 0.0
  %327 = vmatpush1.msra.mxu0 0.0
  %328 = vmatprep.subr.mxu0 0.0
  %329 = vmatpush1.msra.mxu0 0.0
  %330 = vmatprep.subr.mxu0 0.0
  %331 = vmatpush1.msra.mxu0 0.0
  %332 = vmatprep.subr.mxu0 0.0
  %333 = vmatpush1.msra.mxu0 0.0
  %334 = vmatprep.subr.mxu0 0.0
  %335 = vmatpush1.msra.mxu0 0.0
  %336 = vmatprep.subr.mxu0 0.0
  %337 = vmatpush1.msra.mxu0 0.0
  %338 = vmatprep.subr.mxu0 0.0
  %339 = vmatpush1.msra.mxu0 0.0
  %340 = vmatprep.subr.mxu0 0.0
  %341 = vmatpush1.msra.mxu0 0.0
  %342 = vmatprep.subr.mxu0 0.0
  %343 = vmatpush1.msra.mxu0 0.0
  %344 = vmatprep.subr.mxu0 0.0
  %345 = vmatpush1.msra.mxu0 0.0
  %346 = vmatprep.subr.mxu0 0.0
  %347 = vmatpush1.msra.mxu0 0.0
  %348 = vmatprep.subr.mxu0 0.0
  %349 = vmatpush1.msra.mxu0 0.0
  %350 = vmatprep.subr.mxu0 0.0
  %351 = vmatpush1.msra.mxu0 0.0
  %352 = vmatprep.subr.mxu0 0.0
  %353 = vmatpush1.msra.mxu0 0.0
  %354 = vmatprep.subr.mxu0 0.0
  %355 = vmatpush1.msra.mxu0 0.0
  %356 = vmatprep.subr.mxu0 0.0
  %357 = vmatpush1.msra.mxu0 0.0
  %358 = vmatprep.subr.mxu0 0.0
  %359 = vmatpush1.msra.mxu0 0.0
  %360 = vmatprep.mubr.f32.mxu0 0.0
  %361 = vmatmul.mubr.f32.gmra.mrb[0].mxu0 %v120
  %v362 = vpop.f32.mrb[0].mxu0
  %v363 = vadd.f32 %v117, %v362
  %v364 = vpop.f32.mrb[0].mxu0
  %v365 = vadd.f32 %v117, %v364
  %366 = vdwg.mxu0
  %v367 = vmax.f32 %v363, 0.0
  %v368 = vmax.f32 %v365, 0.0
  %v370 = vadd.f32 %v367, %v210
  %v371 = vadd.f32 %v368, %v212
  %v374 = vcombine.low %v370, %v371
  %s376 = scalar_lea.vmem %s5, 8
  %377 = vst [vmem:[%s376] sm:$0xff] %v374
  // Predicated region
  $region22: #{resblock1x1.1} parent=0 // pred_check
    _
  $region23: #{resblock1x1.1} parent=0 // pred_check_branch
    %379 = sbr.rel (0) target = $region25
  $region24: #{resblock1x1.1} parent=0 // pred_region
    _
  $region25: #{resblock1x1.1} parent=0 // pred_fallthru
    _
  // Predicated region
  $region26: #{resblock1x1.1} parent=0 // pred_check
    _
  $region27: #{resblock1x1.1} parent=0 // pred_check_branch
    %381 = sbr.rel (0) target = $region29
  $region28: #{resblock1x1.1} parent=0 // pred_region
    _
  $region29: #{resblock1x1.1} parent=0 // pred_fallthru
    _

</llo_original>
